<compile_context>
chip_gen: v6e
topology: v6e:2x2x1
jax: 0.10.0
libtpu: 0.0.40
codegen_flags: <defaults>
</compile_context>

<pallas_src>
import functools

import numpy as np
import jax
import jax.numpy as jnp
from jax.experimental import pallas as pl
from jax.experimental.pallas import tpu as pltpu

_HEAD_TYPES = ("bus", "generator")
_MAX_TILE = 2048          # row-tile cap; per-tile VMEM stays tiny at these widths


def _round_up(x, m):
    return (x + m - 1) // m * m


# ---------------------------------------------------------------------------
# Kernel: one row tile of one node type (type selected via scalar prefetch)
# ---------------------------------------------------------------------------

def _fused_hgnn_kernel(tid_ref, x_ref, w1_ref, b1_ref, w2_ref, b2_ref, h_ref, o_ref):
    """hidden = x @ W1[t] + b1[t];  head = hidden @ W2[t] + b2[t].

    W1 is stacked/pre-transposed to [T, F_max, H]; W2 to [T, H, F_out] (zeros for
    non-head node types).  Both dots hit the MXU directly; `hidden` stays in
    registers/VMEM between them (no HBM round-trip).
    """
    del tid_ref  # consumed only by the index_maps (scalar prefetch)
    h = jnp.dot(x_ref[...], w1_ref[...], preferred_element_type=jnp.float32)
    h = h + b1_ref[...]
    h_ref[...] = h.astype(h_ref.dtype)
    # TODO(synk): for large-N deployments on v6e/v7x, cast x/W1/W2 to bf16 before
    # the dots (keep preferred_element_type=f32) to approach MXU peak.
    o = jnp.dot(h, w2_ref[...], preferred_element_type=jnp.float32)
    o = o + b2_ref[...]
    o_ref[...] = o.astype(o_ref.dtype)


# ---------------------------------------------------------------------------
# Fused forward: single pallas_call over all node types
# ---------------------------------------------------------------------------

@jax.jit
def _fused_forward(w1, b1, w2, b2, *xs):
    t_cnt, f_max, hidden = w1.shape
    f_out = w2.shape[-1]
    assert len(xs) == t_cnt
    ns = [int(x.shape[0]) for x in xs]
    tm = min(_MAX_TILE, _round_up(max(ns), 8))

    # Pad each node type's rows to a multiple of tm (so no tile straddles two
    # types) and its features to the common F_max, then concatenate.
    segs, offsets, tiles_per_type = [], [], []
    off = 0
    for x in xs:
        n, f_in = x.shape
        n_pad = _round_up(n, tm)
        xp = jnp.zeros((n_pad, f_max), x.dtype).at[:n, :f_in].set(x)
        segs.append(xp)
        offsets.append(off)
        tiles_per_type.append(n_pad // tm)
        off += n_pad
    x_all = jnp.concatenate(segs, axis=0) if len(segs) > 1 else segs[0]
    n_total = off
    num_tiles = n_total // tm
    # Per-tile node-type id (trace-time constant -> SMEM via scalar prefetch).
    type_ids = jnp.asarray(
        np.concatenate([np.full(c, ti, np.int32)
                        for ti, c in enumerate(tiles_per_type)]))

    hidden_all, head_all = pl.pallas_call(
        _fused_hgnn_kernel,
        out_shape=(
            jax.ShapeDtypeStruct((n_total, hidden), x_all.dtype),
            jax.ShapeDtypeStruct((n_total, f_out), x_all.dtype),
        ),
        grid_spec=pltpu.PrefetchScalarGridSpec(
            num_scalar_prefetch=1,
            grid=(num_tiles,),
            in_specs=[
                # x: row-tiled, narrow (F_max) load — no lane padding of inputs.
                pl.BlockSpec((tm, f_max), lambda i, tid: (i, 0)),
                # Per-type weights/biases, selected by the prefetched type id.
                pl.BlockSpec((None, f_max, hidden), lambda i, tid: (tid[i], 0, 0)),
                pl.BlockSpec((None, 1, hidden), lambda i, tid: (tid[i], 0, 0)),
                pl.BlockSpec((None, hidden, f_out), lambda i, tid: (tid[i], 0, 0)),
                pl.BlockSpec((None, 1, f_out), lambda i, tid: (tid[i], 0, 0)),
            ],
            out_specs=(
                pl.BlockSpec((tm, hidden), lambda i, tid: (i, 0)),
                # Head emitted at true width (2 == full array dim): tiny bytes,
                # no 64x write amplification, no wrapper slice pass.
                pl.BlockSpec((tm, f_out), lambda i, tid: (i, 0)),
            ),
        ),
        compiler_params=pltpu.CompilerParams(
            dimension_semantics=("parallel",)),
    )(type_ids, x_all, w1, b1, w2, b2)

    hid = tuple(hidden_all[o:o + n] for o, n in zip(offsets, ns))
    out = tuple(head_all[o:o + n] for o, n in zip(offsets, ns))
    return hid, out


# ---------------------------------------------------------------------------
# Parameter init (matches HGNN_Base.__init__ shapes, PyTorch Linear layout)
# ---------------------------------------------------------------------------

def init_hgnn_base_params(key, in_dims, hidden_channels, out_channels=2):
    params = {"lin_dict": {}, "out_dict": {}}
    keys = jax.random.split(key, 2 * len(in_dims) + 4)
    k_idx = 0
    for node_type, f_in in sorted(in_dims.items()):
        w_key, b_key = keys[k_idx], keys[k_idx + 1]
        k_idx += 2
        scale = 1.0 / jnp.sqrt(jnp.float32(f_in))
        params["lin_dict"][node_type] = {
            "w": jax.random.uniform(
                w_key, (hidden_channels, f_in), jnp.float32, -scale, scale),
            "b": jax.random.uniform(
                b_key, (hidden_channels,), jnp.float32, -scale, scale),
        }
    for node_type in _HEAD_TYPES:
        w_key, b_key = keys[k_idx], keys[k_idx + 1]
        k_idx += 2
        scale = 1.0 / jnp.sqrt(jnp.float32(hidden_channels))
        params["out_dict"][node_type] = {
            "w": jax.random.uniform(
                w_key, (out_channels, hidden_channels), jnp.float32, -scale, scale),
            "b": jax.random.uniform(
                b_key, (out_channels,), jnp.float32, -scale, scale),
        }
    return params


def prepare_hgnn_params(params):
    """One-time layout prep: transpose, stack and zero-pad all per-type weights."""
    lin, out = params["lin_dict"], params["out_dict"]
    node_types = tuple(sorted(lin.keys()))
    t_cnt = len(node_types)
    hidden = int(lin[node_types[0]]["w"].shape[0])
    f_max = max(int(lin[t]["w"].shape[1]) for t in node_types)
    f_out = int(next(iter(out.values()))["w"].shape[0])

    w1 = jnp.zeros((t_cnt, f_max, hidden), jnp.float32)
    b1 = jnp.zeros((t_cnt, 1, hidden), jnp.float32)
    w2 = jnp.zeros((t_cnt, hidden, f_out), jnp.float32)   # zeros for non-head types
    b2 = jnp.zeros((t_cnt, 1, f_out), jnp.float32)
    for ti, t in enumerate(node_types):
        w = lin[t]["w"]                       # [H, F_in] (PyTorch layout)
        f_in = w.shape[1]
        w1 = w1.at[ti, :f_in, :].set(w.T)     # -> [F_in, H]
        b1 = b1.at[ti, 0, :].set(lin[t]["b"])
        if t in out:
            w2 = w2.at[ti].set(out[t]["w"].T)  # [H, F_out]
            b2 = b2.at[ti, 0, :].set(out[t]["b"])
    return {"node_types": node_types, "w1": w1, "b1": b1, "w2": w2, "b2": b2}


# ---------------------------------------------------------------------------
# Forward
# ---------------------------------------------------------------------------

def hgnn_base_forward(prep, x_dict, edge_index_dict=None, edge_attr_dict=None):
    # TODO(synk): edge_index_dict message passing not implemented — the reference
    #             base-class forward() raises NotImplementedError.
    node_types = prep["node_types"]
    assert set(x_dict.keys()) == set(node_types)
    xs = tuple(x_dict[t] for t in node_types)
    hid, out = _fused_forward(prep["w1"], prep["b1"], prep["w2"], prep["b2"], *xs)
    hidden_dict = dict(zip(node_types, hid))
    out_dict = {t: o for t, o in zip(node_types, out) if t in _HEAD_TYPES}
    return hidden_dict, out_dict


def _reference_linear(x, w, b):
    return x @ w.T + b


if __name__ == "__main__":
    key = jax.random.PRNGKey(0)

    # metadata[0] = node types with their (fixed) input feature dims.
    in_dims = {"bus": 8, "generator": 6, "load": 4}
    hidden_channels = 32
    out_channels = 2
    num_nodes = {"bus": 16, "generator": 16, "load": 16}

    k_param, k_data = jax.random.split(key)
    params = init_hgnn_base_params(k_param, in_dims, hidden_channels, out_channels)
    prep = prepare_hgnn_params(params)   # one-time weight layout prep

    data_keys = jax.random.split(k_data, len(in_dims))
    x_dict = {}
    for dk, (node_type, f_in) in zip(data_keys, sorted(in_dims.items())):
        x_dict[node_type] = jax.random.normal(
            dk, (num_nodes[node_type], f_in), jnp.float32)

    hidden_dict, out_dict = hgnn_base_forward(params=None, x_dict=None) if False else \
        hgnn_base_forward(prep, x_dict)
    jax.block_until_ready((hidden_dict, out_dict))

    # correctness check against plain-JAX reference
    for node_type, x in x_dict.items():
        p = params["lin_dict"][node_type]
        ref_h = _reference_linear(x, p["w"], p["b"])
        assert jnp.allclose(hidden_dict[node_type], ref_h, atol=1e-5, rtol=1e-5), node_type
    for node_type in _HEAD_TYPES:
        p = params["out_dict"][node_type]
        ref_o = _reference_linear(hidden_dict[node_type], p["w"], p["b"])
        assert jnp.allclose(out_dict[node_type], ref_o, atol=1e-5, rtol=1e-5), node_type

    # shape checks consistent with the PyTorch module
    for node_type in in_dims:
        assert hidden_dict[node_type].shape == (num_nodes[node_type], hidden_channels)
    for node_type in _HEAD_TYPES:
        assert out_dict[node_type].shape == (num_nodes[node_type], out_channels)

    print("KERNEL_OK")
</pallas_src>

<mosaic_0001>
module attributes {stable_mosaic.version = 11 : i64} {
  func.func @_fused_hgnn_kernel(%arg0: i32, %arg1: memref<3xi32, #tpu.memory_space<smem>>, %arg2: memref<16x8xf32, #tpu.memory_space<vmem>>, %arg3: memref<1x8x32xf32, #tpu.memory_space<vmem>>, %arg4: memref<1x1x32xf32, #tpu.memory_space<vmem>>, %arg5: memref<1x32x2xf32, #tpu.memory_space<vmem>>, %arg6: memref<1x1x2xf32, #tpu.memory_space<vmem>>, %arg7: memref<16x32xf32, #tpu.memory_space<vmem>>, %arg8: memref<16x2xf32, #tpu.memory_space<vmem>>) attributes {dimension_semantics = [#tpu.dimension_semantics<parallel>], iteration_bounds = array<i64: 3>, scalar_prefetch = 1 : i64, scratch_operands = 0 : i64, tpu.core_type = #tpu.core_type<tc>, window_params = [{transform_indices = @transform_0, window_bounds = array<i64: 16, 8>}, {transform_indices = @transform_1, window_bounds = array<i64: 1, 8, 32>}, {transform_indices = @transform_2, window_bounds = array<i64: 1, 1, 32>}, {transform_indices = @transform_3, window_bounds = array<i64: 1, 32, 2>}, {transform_indices = @transform_4, window_bounds = array<i64: 1, 1, 2>}, {transform_indices = @transform_5, window_bounds = array<i64: 16, 32>}, {transform_indices = @transform_6, window_bounds = array<i64: 16, 2>}]} {
    %c0 = arith.constant 0 : index
    %c0_0 = arith.constant 0 : index
    %0 = vector.load %arg2[%c0, %c0_0] : memref<16x8xf32, #tpu.memory_space<vmem>>, vector<16x8xf32>
    %c0_1 = arith.constant 0 : index
    %c0_2 = arith.constant 0 : index
    %c0_3 = arith.constant 0 : index
    %1 = vector.load %arg3[%c0_1, %c0_2, %c0_3] : memref<1x8x32xf32, #tpu.memory_space<vmem>>, vector<1x8x32xf32>
    %2 = vector.shape_cast %1 : vector<1x8x32xf32> to vector<8x32xf32>
    %cst = arith.constant dense<0.000000e+00> : vector<16x32xf32>
    %3 = tpu.matmul %0, %2, %cst {dimension_numbers = #tpu.dot_dimension_numbers<[1], [0], [0], [1], [0, 0, 1, 1], [], []>} : vector<16x8xf32>, vector<8x32xf32>, vector<16x32xf32> -> vector<16x32xf32>
    %c0_4 = arith.constant 0 : index
    %c0_5 = arith.constant 0 : index
    %c0_6 = arith.constant 0 : index
    %4 = vector.load %arg4[%c0_4, %c0_5, %c0_6] : memref<1x1x32xf32, #tpu.memory_space<vmem>>, vector<1x1x32xf32>
    %5 = vector.shape_cast %4 : vector<1x1x32xf32> to vector<1x32xf32>
    %6 = vector.broadcast %5 : vector<1x32xf32> to vector<16x32xf32>
    %7 = arith.addf %3, %6 : vector<16x32xf32>
    %c0_7 = arith.constant 0 : index
    %c0_8 = arith.constant 0 : index
    %8 = vector.load %arg7[%c0_7, %c0_8] : memref<16x32xf32, #tpu.memory_space<vmem>>, vector<16x32xf32>
    tpu.vector_store %arg7[%c0_7, %c0_8], %7 {strides = array<i32>} : memref<16x32xf32, #tpu.memory_space<vmem>>, vector<16x32xf32>,
    %c0_9 = arith.constant 0 : index
    %c0_10 = arith.constant 0 : index
    %c0_11 = arith.constant 0 : index
    %9 = vector.load %arg5[%c0_9, %c0_10, %c0_11] : memref<1x32x2xf32, #tpu.memory_space<vmem>>, vector<1x32x2xf32>
    %10 = vector.shape_cast %9 : vector<1x32x2xf32> to vector<32x2xf32>
    %cst_12 = arith.constant dense<0.000000e+00> : vector<16x2xf32>
    %11 = tpu.matmul %7, %10, %cst_12 {dimension_numbers = #tpu.dot_dimension_numbers<[1], [0], [0], [1], [0, 0, 1, 1], [], []>} : vector<16x32xf32>, vector<32x2xf32>, vector<16x2xf32> -> vector<16x2xf32>
    %c0_13 = arith.constant 0 : index
    %c0_14 = arith.constant 0 : index
    %c0_15 = arith.constant 0 : index
    %12 = vector.load %arg6[%c0_13, %c0_14, %c0_15] : memref<1x1x2xf32, #tpu.memory_space<vmem>>, vector<1x1x2xf32>
    %13 = vector.shape_cast %12 : vector<1x1x2xf32> to vector<1x2xf32>
    %14 = vector.broadcast %13 : vector<1x2xf32> to vector<16x2xf32>
    %15 = arith.addf %11, %14 : vector<16x2xf32>
    %c0_16 = arith.constant 0 : index
    %c0_17 = arith.constant 0 : index
    %16 = vector.load %arg8[%c0_16, %c0_17] : memref<16x2xf32, #tpu.memory_space<vmem>>, vector<16x2xf32>
    tpu.vector_store %arg8[%c0_16, %c0_17], %15 {strides = array<i32>} : memref<16x2xf32, #tpu.memory_space<vmem>>, vector<16x2xf32>,
    return
  }
  func.func @transform_0(%arg0: i32, %arg1: memref<3xi32, #tpu.memory_space<smem>>) -> (i32, i32) {
    %c0_i32 = arith.constant 0 : i32
    %c0_i32_0 = arith.constant 0 : i32
    return %arg0, %c0_i32 : i32, i32
  }
  func.func @transform_1(%arg0: i32, %arg1: memref<3xi32, #tpu.memory_space<smem>>) -> (i32, i32, i32) {
    %0 = arith.index_cast %arg0 : i32 to index
    %1 = memref.load %arg1[%0] : memref<3xi32, #tpu.memory_space<smem>>
    %c0_i32 = arith.constant 0 : i32
    %c0_i32_0 = arith.constant 0 : i32
    %c0_i32_1 = arith.constant 0 : i32
    return %1, %c0_i32, %c0_i32_0 : i32, i32, i32
  }
  func.func @transform_2(%arg0: i32, %arg1: memref<3xi32, #tpu.memory_space<smem>>) -> (i32, i32, i32) {
    %0 = arith.index_cast %arg0 : i32 to index
    %1 = memref.load %arg1[%0] : memref<3xi32, #tpu.memory_space<smem>>
    %c0_i32 = arith.constant 0 : i32
    %c0_i32_0 = arith.constant 0 : i32
    %c0_i32_1 = arith.constant 0 : i32
    return %1, %c0_i32, %c0_i32_0 : i32, i32, i32
  }
  func.func @transform_3(%arg0: i32, %arg1: memref<3xi32, #tpu.memory_space<smem>>) -> (i32, i32, i32) {
    %0 = arith.index_cast %arg0 : i32 to index
    %1 = memref.load %arg1[%0] : memref<3xi32, #tpu.memory_space<smem>>
    %c0_i32 = arith.constant 0 : i32
    %c0_i32_0 = arith.constant 0 : i32
    %c0_i32_1 = arith.constant 0 : i32
    return %1, %c0_i32, %c0_i32_0 : i32, i32, i32
  }
  func.func @transform_4(%arg0: i32, %arg1: memref<3xi32, #tpu.memory_space<smem>>) -> (i32, i32, i32) {
    %0 = arith.index_cast %arg0 : i32 to index
    %1 = memref.load %arg1[%0] : memref<3xi32, #tpu.memory_space<smem>>
    %c0_i32 = arith.constant 0 : i32
    %c0_i32_0 = arith.constant 0 : i32
    %c0_i32_1 = arith.constant 0 : i32
    return %1, %c0_i32, %c0_i32_0 : i32, i32, i32
  }
  func.func @transform_5(%arg0: i32, %arg1: memref<3xi32, #tpu.memory_space<smem>>) -> (i32, i32) {
    %c0_i32 = arith.constant 0 : i32
    %c0_i32_0 = arith.constant 0 : i32
    return %arg0, %c0_i32 : i32, i32
  }
  func.func @transform_6(%arg0: i32, %arg1: memref<3xi32, #tpu.memory_space<smem>>) -> (i32, i32) {
    %c0_i32 = arith.constant 0 : i32
    %c0_i32_0 = arith.constant 0 : i32
    return %arg0, %c0_i32 : i32, i32
  }
}

</mosaic_0001>

<llo_original>
// kernel: _fused_forward.1
$region0: #{_fused_forward.1}
  #allocation0 [shape = 'u32[]', space=smem, size = 0x4, offset = 0x4, fixed_abs, tag = 'smem constant byte address 0x4 - core index']
  #allocation1 [shape = 'u32[144,128]{1,0:T(1,128)}', space=vmem, size = 0x12000, scoped, tag = 'internal scratch']
  #allocation2 [shape = 's32[1]{0}', space=sflag, size = 0x4, scoped, tag = 'scoped memory for _fused_forward.1']
  #allocation3 [shape = 'u8[512]{0}', space=smem, size = 0x200, scoped, tag = 'prefetched SMEM operand 0']
  %s0 = inlined_call_operand.vmem [shape: s32[3], index: 0, kind: input, shape index: {}]
  %s1 = inlined_call_operand.vmem [shape: f32[48,8], index: 1, kind: input, shape index: {}]
  %s2 = inlined_call_operand.vmem [shape: f32[3,8,32], index: 2, kind: input, shape index: {}]
  %s3 = inlined_call_operand.vmem [shape: f32[3,1,32], index: 3, kind: input, shape index: {}]
  %s4 = inlined_call_operand.vmem [shape: f32[3,32,2], index: 4, kind: input, shape index: {}]
  %s5 = inlined_call_operand.vmem [shape: f32[3,1,2], index: 5, kind: input, shape index: {}]
  %s6 = inlined_call_operand.vmem [shape: f32[48,32], index: 6, kind: output, shape index: {0}]
  %s7 = inlined_call_operand.vmem [shape: f32[48,2], index: 7, kind: output, shape index: {1}]
  %8 = xla_tuple %s6, %s7
  %s9 = sld [smem:[#allocation0]]
  $region61: #{_fused_forward.1} parent=0
    _
  %s11 = ssub.s32 1, %s9
  %s12 = scalar_select 0, %s11, %s9
  %s13 = sshll.u32 %s0, 4
  %s14 = int_to_ptr.vmem [resolvable:$true] %s13
  %16 = dma.vmem_to_smem %s14, 16, [#allocation3], [#allocation2]
  %17 = dma.done [#allocation2], 16
  %18 = sfence
  loop: start=0, step=1, limit=5
  $region2: #{_fused_forward.1} parent=0 // loop_pre_header
    _
  $region3: #{_fused_forward.1} parent=0 // loop_header
    %s20 = sphi 0, %s24
    %p21 = scmp.ge.s32.totalorder %s20, 5
    %s30 = sphi 0, %s32
    %s33 = sphi 0, %s30
    %s34 = sphi 0, %s33
    %s50 = sphi 0, %s34
    %s58 = sphi 0, %s60
    %s61 = sphi 0, %s58
    %s62 = sphi 0, %s61
    %s78 = sphi 0, %s62
    %s86 = sphi 0, %s88
    %s89 = sphi 0, %s86
    %s90 = sphi 0, %s89
    %s106 = sphi 0, %s90
    %s114 = sphi 0, %s116
    %s117 = sphi 0, %s114
    %s118 = sphi 0, %s117
    %s134 = sphi 0, %s118
    %s142 = sphi 0, %s144
    %s145 = sphi 0, %s142
    %s146 = sphi 0, %s145
    %s162 = sphi 0, %s146
    %s168 = sphi 0, %s170
    %s171 = sphi 0, %s168
    %s172 = sphi 0, %s171
    %s188 = sphi 0, %s172
    %s194 = sphi 0, %s196
    %s197 = sphi 0, %s194
    %s198 = sphi 0, %s197
    %s214 = sphi 0, %s198
  $region4: #{_fused_forward.1} parent=0 // loop_header_branch
    %23 = sbr.rel (%p21) target = $region8
  $region5: #{_fused_forward.1} parent=0 // loop_body
    %s25 = ssub.s32 %s20, 1
    %s26 = ssub.s32 %s20, 2
    %s27 = sadd.s32 %s20, 1
    %s28 = ssub.s32 %s20, %s27
    %p29 = scmp.eq.s32.totalorder %s28, 0
    %s31 = sadd.s32 %s30, 1
    %s32 = scalar_select %p29, %s30, %s31
    %p35 = pneg %p29
    %p36 = scmp.eq.s32.totalorder %s20, 2
    %p37 = por %p35, %p36
    %p38 = scmp.ne.s32.totalorder %s30, %s33
    %p39 = scmp.eq.s32.totalorder %s20, 0
    %p40 = por %p38, %p39
    %p41 = scmp.ne.s32.totalorder %s30, %s33
    %p42 = scmp.eq.s32.totalorder %s25, 2
    %p43 = por %p41, %p42
    %p44 = scmp.ne.s32.totalorder %s33, %s34
    %p45 = scmp.eq.s32.totalorder %s25, 0
    %p46 = por %p44, %p45
    %p47 = scmp.ne.s32.totalorder %s33, %s34
    %p48 = scmp.eq.s32.totalorder %s26, 2
    %p49 = por %p47, %p48
    %p51 = scmp.ne.s32.totalorder %s34, %s50
    %p52 = scmp.eq.s32.totalorder %s26, 0
    %p53 = por %p51, %p52
    %s54 = sld [smem:[#allocation3 + %s20]]
    %s55 = sld [smem:[#allocation3 + %s27]]
    %s56 = ssub.s32 %s54, %s55
    %p57 = scmp.eq.s32.totalorder %s56, 0
    %s59 = sadd.s32 %s58, 1
    %s60 = scalar_select %p57, %s58, %s59
    %p63 = pneg %p57
    %p64 = scmp.eq.s32.totalorder %s20, 2
    %p65 = por %p63, %p64
    %p66 = scmp.ne.s32.totalorder %s58, %s61
    %p67 = scmp.eq.s32.totalorder %s20, 0
    %p68 = por %p66, %p67
    %p69 = scmp.ne.s32.totalorder %s58, %s61
    %p70 = scmp.eq.s32.totalorder %s25, 2
    %p71 = por %p69, %p70
    %p72 = scmp.ne.s32.totalorder %s61, %s62
    %p73 = scmp.eq.s32.totalorder %s25, 0
    %p74 = por %p72, %p73
    %p75 = scmp.ne.s32.totalorder %s61, %s62
    %p76 = scmp.eq.s32.totalorder %s26, 2
    %p77 = por %p75, %p76
    %p79 = scmp.ne.s32.totalorder %s62, %s78
    %p80 = scmp.eq.s32.totalorder %s26, 0
    %p81 = por %p79, %p80
    %s82 = sld [smem:[#allocation3 + %s20]]
    %s83 = sld [smem:[#allocation3 + %s27]]
    %s84 = ssub.s32 %s82, %s83
    %p85 = scmp.eq.s32.totalorder %s84, 0
    %s87 = sadd.s32 %s86, 1
    %s88 = scalar_select %p85, %s86, %s87
    %p91 = pneg %p85
    %p92 = scmp.eq.s32.totalorder %s20, 2
    %p93 = por %p91, %p92
    %p94 = scmp.ne.s32.totalorder %s86, %s89
    %p95 = scmp.eq.s32.totalorder %s20, 0
    %p96 = por %p94, %p95
    %p97 = scmp.ne.s32.totalorder %s86, %s89
    %p98 = scmp.eq.s32.totalorder %s25, 2
    %p99 = por %p97, %p98
    %p100 = scmp.ne.s32.totalorder %s89, %s90
    %p101 = scmp.eq.s32.totalorder %s25, 0
    %p102 = por %p100, %p101
    %p103 = scmp.ne.s32.totalorder %s89, %s90
    %p104 = scmp.eq.s32.totalorder %s26, 2
    %p105 = por %p103, %p104
    %p107 = scmp.ne.s32.totalorder %s90, %s106
    %p108 = scmp.eq.s32.totalorder %s26, 0
    %p109 = por %p107, %p108
    %s110 = sld [smem:[#allocation3 + %s20]]
    %s111 = sld [smem:[#allocation3 + %s27]]
    %s112 = ssub.s32 %s110, %s111
    %p113 = scmp.eq.s32.totalorder %s112, 0
    %s115 = sadd.s32 %s114, 1
    %s116 = scalar_select %p113, %s114, %s115
    %p119 = pneg %p113
    %p120 = scmp.eq.s32.totalorder %s20, 2
    %p121 = por %p119, %p120
    %p122 = scmp.ne.s32.totalorder %s114, %s117
    %p123 = scmp.eq.s32.totalorder %s20, 0
    %p124 = por %p122, %p123
    %p125 = scmp.ne.s32.totalorder %s114, %s117
    %p126 = scmp.eq.s32.totalorder %s25, 2
    %p127 = por %p125, %p126
    %p128 = scmp.ne.s32.totalorder %s117, %s118
    %p129 = scmp.eq.s32.totalorder %s25, 0
    %p130 = por %p128, %p129
    %p131 = scmp.ne.s32.totalorder %s117, %s118
    %p132 = scmp.eq.s32.totalorder %s26, 2
    %p133 = por %p131, %p132
    %p135 = scmp.ne.s32.totalorder %s118, %s134
    %p136 = scmp.eq.s32.totalorder %s26, 0
    %p137 = por %p135, %p136
    %s138 = sld [smem:[#allocation3 + %s20]]
    %s139 = sld [smem:[#allocation3 + %s27]]
    %s140 = ssub.s32 %s138, %s139
    %p141 = scmp.eq.s32.totalorder %s140, 0
    %s143 = sadd.s32 %s142, 1
    %s144 = scalar_select %p141, %s142, %s143
    %p147 = pneg %p141
    %p148 = scmp.eq.s32.totalorder %s20, 2
    %p149 = por %p147, %p148
    %p150 = scmp.ne.s32.totalorder %s142, %s145
    %p151 = scmp.eq.s32.totalorder %s20, 0
    %p152 = por %p150, %p151
    %p153 = scmp.ne.s32.totalorder %s142, %s145
    %p154 = scmp.eq.s32.totalorder %s25, 2
    %p155 = por %p153, %p154
    %p156 = scmp.ne.s32.totalorder %s145, %s146
    %p157 = scmp.eq.s32.totalorder %s25, 0
    %p158 = por %p156, %p157
    %p159 = scmp.ne.s32.totalorder %s145, %s146
    %p160 = scmp.eq.s32.totalorder %s26, 2
    %p161 = por %p159, %p160
    %p163 = scmp.ne.s32.totalorder %s146, %s162
    %p164 = scmp.eq.s32.totalorder %s26, 0
    %p165 = por %p163, %p164
    %s166 = ssub.s32 %s20, %s27
    %p167 = scmp.eq.s32.totalorder %s166, 0
    %s169 = sadd.s32 %s168, 1
    %s170 = scalar_select %p167, %s168, %s169
    %p173 = pneg %p167
    %p174 = scmp.eq.s32.totalorder %s20, 2
    %p175 = por %p173, %p174
    %p176 = scmp.ne.s32.totalorder %s168, %s171
    %p177 = scmp.eq.s32.totalorder %s20, 0
    %p178 = por %p176, %p177
    %p179 = scmp.ne.s32.totalorder %s168, %s171
    %p180 = scmp.eq.s32.totalorder %s25, 2
    %p181 = por %p179, %p180
    %p182 = scmp.ne.s32.totalorder %s171, %s172
    %p183 = scmp.eq.s32.totalorder %s25, 0
    %p184 = por %p182, %p183
    %p185 = scmp.ne.s32.totalorder %s171, %s172
    %p186 = scmp.eq.s32.totalorder %s26, 2
    %p187 = por %p185, %p186
    %p189 = scmp.ne.s32.totalorder %s172, %s188
    %p190 = scmp.eq.s32.totalorder %s26, 0
    %p191 = por %p189, %p190
    %s192 = ssub.s32 %s20, %s27
    %p193 = scmp.eq.s32.totalorder %s192, 0
    %s195 = sadd.s32 %s194, 1
    %s196 = scalar_select %p193, %s194, %s195
    %p199 = pneg %p193
    %p200 = scmp.eq.s32.totalorder %s20, 2
    %p201 = por %p199, %p200
    %p202 = scmp.ne.s32.totalorder %s194, %s197
    %p203 = scmp.eq.s32.totalorder %s20, 0
    %p204 = por %p202, %p203
    %p205 = scmp.ne.s32.totalorder %s194, %s197
    %p206 = scmp.eq.s32.totalorder %s25, 2
    %p207 = por %p205, %p206
    %p208 = scmp.ne.s32.totalorder %s197, %s198
    %p209 = scmp.eq.s32.totalorder %s25, 0
    %p210 = por %p208, %p209
    %p211 = scmp.ne.s32.totalorder %s197, %s198
    %p212 = scmp.eq.s32.totalorder %s26, 2
    %p213 = por %p211, %p212
    %p215 = scmp.ne.s32.totalorder %s198, %s214
    %p216 = scmp.eq.s32.totalorder %s26, 0
    %p217 = por %p215, %p216
    %p218 = scmp.le.s32.totalorder 1, %s20
    %p219 = scmp.lt.s32.totalorder %s20, 4
    %p220 = pnand %p218, %p219
    %p221 = pneg %p220
    // Predicated region
    $region9: #{_fused_forward.1} parent=5 // pred_check
      _
    $region10: #{_fused_forward.1} parent=5 // pred_check_branch
      %223 = sbr.rel (%p220) target = $region12
    $region11: #{_fused_forward.1} parent=5 // pred_region
      %s224 = ssub.s32 %s20, 1
    $region12: #{_fused_forward.1} parent=5 // pred_fallthru
      _
    %p225 = scmp.lt.s32.totalorder %s20, 3
    // Predicated region
    $region13: #{_fused_forward.1} parent=5 // pred_check
      %p226 = pneg %p225
    $region14: #{_fused_forward.1} parent=5 // pred_check_branch
      %228 = sbr.rel (%p226) target = $region16
    $region15: #{_fused_forward.1} parent=5 // pred_region
      // Predicated region
      $region17: #{_fused_forward.1} parent=15 // pred_check
        %p229 = pneg %p40
      $region18: #{_fused_forward.1} parent=15 // pred_check_branch
        %231 = sbr.rel (%p229) target = $region20
      $region19: #{_fused_forward.1} parent=15 // pred_region
        %s232 = smul.u32 2, %s20
        %p233 = scmp.lt.s32.totalorder %s232, 5
        %s234 = scalar_select %p233, %s232, 5
        %s235 = smul.addr %s234, 8
        %s236 = scalar_lea.vmem %s1, %s235
        %s237 = smul.u32 2, %s20
      $region20: #{_fused_forward.1} parent=15 // pred_fallthru
        _
      // Predicated region
      $region21: #{_fused_forward.1} parent=15 // pred_check
        %p238 = pneg %p68
      $region22: #{_fused_forward.1} parent=15 // pred_check_branch
        %240 = sbr.rel (%p238) target = $region24
      $region23: #{_fused_forward.1} parent=15 // pred_region
        %s241 = sld [smem:[#allocation3 + %s20]]
        %p242 = scmp.lt.s32.totalorder %s241, 2
        %s243 = scalar_select %p242, %s241, 2
        %s244 = smul.addr %s243, 8
        %s245 = scalar_lea.vmem %s2, %s244
        %s246 = sld [smem:[#allocation3 + %s20]]
      $region24: #{_fused_forward.1} parent=15 // pred_fallthru
        _
      // Predicated region
      $region25: #{_fused_forward.1} parent=15 // pred_check
        %p247 = pneg %p96
      $region26: #{_fused_forward.1} parent=15 // pred_check_branch
        %249 = sbr.rel (%p247) target = $region28
      $region27: #{_fused_forward.1} parent=15 // pred_region
        %s250 = sld [smem:[#allocation3 + %s20]]
        %p251 = scmp.lt.s32.totalorder %s250, 2
        %s252 = scalar_select %p251, %s250, 2
        %s253 = scalar_lea.vmem %s3, %s252
        %s254 = sld [smem:[#allocation3 + %s20]]
      $region28: #{_fused_forward.1} parent=15 // pred_fallthru
        _
      // Predicated region
      $region29: #{_fused_forward.1} parent=15 // pred_check
        %p255 = pneg %p124
      $region30: #{_fused_forward.1} parent=15 // pred_check_branch
        %257 = sbr.rel (%p255) target = $region32
      $region31: #{_fused_forward.1} parent=15 // pred_region
        %s258 = sld [smem:[#allocation3 + %s20]]
        %p259 = scmp.lt.s32.totalorder %s258, 2
        %s260 = scalar_select %p259, %s258, 2
        %s261 = smul.addr %s260, 4
        %s262 = smul.addr %s261, 8
        %s263 = scalar_lea.vmem %s4, %s262
        %s264 = sld [smem:[#allocation3 + %s20]]
      $region32: #{_fused_forward.1} parent=15 // pred_fallthru
        _
      // Predicated region
      $region33: #{_fused_forward.1} parent=15 // pred_check
        %p265 = pneg %p152
      $region34: #{_fused_forward.1} parent=15 // pred_check_branch
        %267 = sbr.rel (%p265) target = $region36
      $region35: #{_fused_forward.1} parent=15 // pred_region
        %s268 = sld [smem:[#allocation3 + %s20]]
        %p269 = scmp.lt.s32.totalorder %s268, 2
        %s270 = scalar_select %p269, %s268, 2
        %s271 = scalar_lea.vmem %s5, %s270
        %s272 = sld [smem:[#allocation3 + %s20]]
      $region36: #{_fused_forward.1} parent=15 // pred_fallthru
        _
    $region16: #{_fused_forward.1} parent=5 // pred_fallthru
      _
    %p273 = scmp.le.s32.totalorder 1, %s20
    %p274 = scmp.lt.s32.totalorder %s20, 4
    %p275 = pnand %p273, %p274
    %p276 = pneg %p275
    // Predicated region
    $region37: #{_fused_forward.1} parent=5 // pred_check
      _
    $region38: #{_fused_forward.1} parent=5 // pred_check_branch
      %278 = sbr.rel (%p275) target = $region40
    $region39: #{_fused_forward.1} parent=5 // pred_region
      %s279 = ssub.s32 %s20, 1
      %s280 = smul.u32 2, %s25
      %p281 = scmp.lt.s32.totalorder %s280, 5
      %s282 = scalar_select %p281, %s280, 5
      %s283 = smul.addr %s282, 8
      %s284 = scalar_lea.vmem %s1, %s283
      %p285 = pneg %p46
      %p286 = pneg %p43
      %s287 = sld [smem:[#allocation3 + %s25]]
      %p288 = scmp.lt.s32.totalorder %s287, 2
      %s289 = scalar_select %p288, %s287, 2
      %s290 = smul.addr %s289, 8
      %s291 = scalar_lea.vmem %s2, %s290
      %p292 = pneg %p74
      %p293 = pneg %p71
      %s294 = sld [smem:[#allocation3 + %s25]]
      %p295 = scmp.lt.s32.totalorder %s294, 2
      %s296 = scalar_select %p295, %s294, 2
      %s297 = scalar_lea.vmem %s3, %s296
      %p298 = pneg %p102
      %p299 = pneg %p99
      %s300 = sld [smem:[#allocation3 + %s25]]
      %p301 = scmp.lt.s32.totalorder %s300, 2
      %s302 = scalar_select %p301, %s300, 2
      %s303 = smul.addr %s302, 4
      %s304 = smul.addr %s303, 8
      %s305 = scalar_lea.vmem %s4, %s304
      %p306 = pneg %p130
      %p307 = pneg %p127
      %s308 = sld [smem:[#allocation3 + %s25]]
      %p309 = scmp.lt.s32.totalorder %s308, 2
      %s310 = scalar_select %p309, %s308, 2
      %s311 = scalar_lea.vmem %s5, %s310
      %p312 = pneg %p158
      %p313 = pneg %p155
      %p314 = pneg %p184
      %p315 = pneg %p181
      %s316 = smul.u32 2, %s25
      %p317 = scmp.lt.s32.totalorder %s316, 5
      %s318 = scalar_select %p317, %s316, 5
      %s319 = smul.addr %s318, 8
      %s320 = scalar_lea.vmem %s6, %s319
      %p321 = pneg %p210
      %p322 = pneg %p207
      %s323 = smul.u32 2, %s25
      %p324 = scmp.lt.s32.totalorder %s323, 5
      %s325 = scalar_select %p324, %s323, 5
      %s326 = smul.addr %s325, 8
      %s327 = scalar_lea.vmem %s7, %s326
      %s328 = smul.u32 2, %s25
      %p329 = scmp.lt.s32.totalorder %s328, 5
      %s330 = scalar_select %p329, %s328, 5
      %s331 = smul.addr %s330, 8
      %s332 = scalar_lea.vmem %s1, %s331
      %s333 = smul.u32 2, %s25
      %s334 = sld [smem:[#allocation3 + %s25]]
      %p335 = scmp.lt.s32.totalorder %s334, 2
      %s336 = scalar_select %p335, %s334, 2
      %s337 = smul.addr %s336, 8
      %s338 = scalar_lea.vmem %s2, %s337
      %s339 = sld [smem:[#allocation3 + %s25]]
      %s340 = sld [smem:[#allocation3 + %s25]]
      %p341 = scmp.lt.s32.totalorder %s340, 2
      %s342 = scalar_select %p341, %s340, 2
      %s343 = scalar_lea.vmem %s3, %s342
      %s344 = sld [smem:[#allocation3 + %s25]]
      %s345 = sld [smem:[#allocation3 + %s25]]
      %p346 = scmp.lt.s32.totalorder %s345, 2
      %s347 = scalar_select %p346, %s345, 2
      %s348 = smul.addr %s347, 4
      %s349 = smul.addr %s348, 8
      %s350 = scalar_lea.vmem %s4, %s349
      %s351 = sld [smem:[#allocation3 + %s25]]
      %s352 = sld [smem:[#allocation3 + %s25]]
      %p353 = scmp.lt.s32.totalorder %s352, 2
      %s354 = scalar_select %p353, %s352, 2
      %s355 = scalar_lea.vmem %s5, %s354
      %s356 = sld [smem:[#allocation3 + %s25]]
      %s357 = smul.u32 2, %s25
      %p358 = scmp.lt.s32.totalorder %s357, 5
      %s359 = scalar_select %p358, %s357, 5
      %s360 = smul.addr %s359, 8
      %s361 = scalar_lea.vmem %s6, %s360
      %s362 = smul.u32 2, %s25
      %s363 = smul.u32 2, %s25
      %p364 = scmp.lt.s32.totalorder %s363, 5
      %s365 = scalar_select %p364, %s363, 5
      %s366 = smul.addr %s365, 8
      %s367 = scalar_lea.vmem %s7, %s366
      %s368 = smul.u32 2, %s25
      %v369 = vld [vmem:[%s332] sm:$0xff]
      %v370 = vld [vmem:[%s332 + $0x8] sm:$0xff]
      %v371 = vld [vmem:[%s338] sm:$0xff]
      %v372 = vld [vmem:[%s343] sm:$0x1]
      %v374 = vlaneseq
      %v375 = vshrl.u32 %v374, 7
      %v376 = vsub.s32 0, %v375
      %v377 = vrot.slane %v372, %v376
      %vm379 = vcmask 64512
      %v381 = vsel %vm379, %v369, 0
      %v384 = vsel %vm379, %v370, 0
      %386 = vmatprep.subr.mxu0 0.0
      %387 = vmatpush1.msra.mxu0 0.0
      %388 = vmatprep.subr.mxu0 0.0
      %389 = vmatpush1.msra.mxu0 0.0
      %390 = vmatprep.subr.mxu0 0.0
      %391 = vmatpush1.msra.mxu0 0.0
      %392 = vmatprep.subr.mxu0 0.0
      %393 = vmatpush1.msra.mxu0 0.0
      %394 = vmatprep.subr.mxu0 0.0
      %395 = vmatpush1.msra.mxu0 0.0
      %396 = vmatprep.subr.mxu0 0.0
      %397 = vmatpush1.msra.mxu0 0.0
      %398 = vmatprep.subr.mxu0 0.0
      %399 = vmatpush1.msra.mxu0 0.0
      %400 = vmatprep.subr.mxu0 0.0
      %401 = vmatpush1.msra.mxu0 0.0
      %402 = vmatprep.subr.mxu0 0.0
      %403 = vmatpush1.msra.mxu0 0.0
      %404 = vmatprep.subr.mxu0 0.0
      %405 = vmatpush1.msra.mxu0 0.0
      %406 = vmatprep.subr.mxu0 0.0
      %407 = vmatpush1.msra.mxu0 0.0
      %408 = vmatprep.subr.mxu0 0.0
      %409 = vmatpush1.msra.mxu0 0.0
      %410 = vmatprep.subr.mxu0 0.0
      %411 = vmatpush1.msra.mxu0 0.0
      %412 = vmatprep.subr.mxu0 0.0
      %413 = vmatpush1.msra.mxu0 0.0
      %414 = vmatprep.subr.mxu0 0.0
      %415 = vmatpush1.msra.mxu0 0.0
      %416 = vmatprep.subr.mxu0 0.0
      %417 = vmatpush1.msra.mxu0 %v371
      %418 = vmatprep.subr.mxu0 0.0
      %419 = vmatpush2.msra.mxu0 0.0
      %420 = vmatprep.subr.mxu0 0.0
      %421 = vmatpush2.msra.mxu0 0.0
      %422 = vmatprep.subr.mxu0 0.0
      %423 = vmatpush2.msra.mxu0 0.0
      %424 = vmatprep.subr.mxu0 0.0
      %425 = vmatpush2.msra.mxu0 0.0
      %426 = vmatprep.subr.mxu0 0.0
      %427 = vmatpush2.msra.mxu0 0.0
      %428 = vmatprep.subr.mxu0 0.0
      %429 = vmatpush2.msra.mxu0 0.0
      %430 = vmatprep.subr.mxu0 0.0
      %431 = vmatpush2.msra.mxu0 0.0
      %432 = vmatprep.subr.mxu0 0.0
      %433 = vmatpush2.msra.mxu0 0.0
      %434 = vmatprep.subr.mxu0 0.0
      %435 = vmatpush2.msra.mxu0 0.0
      %436 = vmatprep.subr.mxu0 0.0
      %437 = vmatpush2.msra.mxu0 0.0
      %438 = vmatprep.subr.mxu0 0.0
      %439 = vmatpush2.msra.mxu0 0.0
      %440 = vmatprep.subr.mxu0 0.0
      %441 = vmatpush2.msra.mxu0 0.0
      %442 = vmatprep.subr.mxu0 0.0
      %443 = vmatpush2.msra.mxu0 0.0
      %444 = vmatprep.subr.mxu0 0.0
      %445 = vmatpush2.msra.mxu0 0.0
      %446 = vmatprep.subr.mxu0 0.0
      %447 = vmatpush2.msra.mxu0 0.0
      %448 = vmatprep.subr.mxu0 0.0
      %449 = vmatpush2.msra.mxu0 0.0
      %450 = vmatprep.mubr.f32.mxu0 0.0
      %451 = vmatmul.mubr.f32.gmra.mxu0 %v381
      %v452 = vpop.f32.mrf.mxu0
      %v453 = vadd.f32 %v377, %v452
      %v454 = vpop.f32.mrf.mxu0
      %455 = vmatprep.mubr.f32.mxu0 0.0
      %456 = vmatmul.mubr.f32.gmra.mxu0 %v384
      %v457 = vpop.f32.mrf.mxu0
      %v458 = vadd.f32 %v377, %v457
      %v459 = vpop.f32.mrf.mxu0
      %460 = vdwg.mxu0
      %vm461 = vcmask 261120
      %462 = vst.msk [vmem:[%s361] sm:$0xff] %vm461, %v453
      %463 = vst.msk [vmem:[%s361 + $0x8] sm:$0xff] %vm461, %v458
      %v464 = vld [vmem:[%s350] sm:$0xff]
      %v465 = vld [vmem:[%s350 + $0x8] sm:$0xff]
      %v466 = vld [vmem:[%s350 + $0x10] sm:$0xff]
      %v467 = vld [vmem:[%s350 + $0x18] sm:$0xff]
      %v468 = vld [vmem:[%s355] sm:$0x1]
      %v470 = vlaneseq
      %v471 = vshrl.u32 %v470, 7
      %v472 = vsub.s32 0, %v471
      %v473 = vrot.slane %v468, %v472
      %v476 = vsel %vm461, %v453, 0
      %v479 = vsel %vm461, %v458, 0
      %481 = vmatprep.subr.mxu0 0.0
      %482 = vmatpush1.msra.mxu0 0.0
      %483 = vmatprep.subr.mxu0 0.0
      %484 = vmatpush1.msra.mxu0 0.0
      %485 = vmatprep.subr.mxu0 0.0
      %486 = vmatpush1.msra.mxu0 0.0
      %487 = vmatprep.subr.mxu0 0.0
      %488 = vmatpush1.msra.mxu0 0.0
      %489 = vmatprep.subr.mxu0 0.0
      %490 = vmatpush1.msra.mxu0 0.0
      %491 = vmatprep.subr.mxu0 0.0
      %492 = vmatpush1.msra.mxu0 0.0
      %493 = vmatprep.subr.mxu0 0.0
      %494 = vmatpush1.msra.mxu0 0.0
      %495 = vmatprep.subr.mxu0 0.0
      %496 = vmatpush1.msra.mxu0 0.0
      %497 = vmatprep.subr.mxu0 0.0
      %498 = vmatpush1.msra.mxu0 0.0
      %499 = vmatprep.subr.mxu0 0.0
      %500 = vmatpush1.msra.mxu0 0.0
      %501 = vmatprep.subr.mxu0 0.0
      %502 = vmatpush1.msra.mxu0 0.0
      %503 = vmatprep.subr.mxu0 0.0
      %504 = vmatpush1.msra.mxu0 0.0
      %505 = vmatprep.subr.mxu0 0.0
      %506 = vmatpush1.msra.mxu0 %v467
      %507 = vmatprep.subr.mxu0 0.0
      %508 = vmatpush1.msra.mxu0 %v466
      %509 = vmatprep.subr.mxu0 0.0
      %510 = vmatpush1.msra.mxu0 %v465
      %511 = vmatprep.subr.mxu0 0.0
      %512 = vmatpush1.msra.mxu0 %v464
      %513 = vmatprep.subr.mxu0 0.0
      %514 = vmatpush2.msra.mxu0 0.0
      %515 = vmatprep.subr.mxu0 0.0
      %516 = vmatpush2.msra.mxu0 0.0
      %517 = vmatprep.subr.mxu0 0.0
      %518 = vmatpush2.msra.mxu0 0.0
      %519 = vmatprep.subr.mxu0 0.0
      %520 = vmatpush2.msra.mxu0 0.0
      %521 = vmatprep.subr.mxu0 0.0
      %522 = vmatpush2.msra.mxu0 0.0
      %523 = vmatprep.subr.mxu0 0.0
      %524 = vmatpush2.msra.mxu0 0.0
      %525 = vmatprep.subr.mxu0 0.0
      %526 = vmatpush2.msra.mxu0 0.0
      %527 = vmatprep.subr.mxu0 0.0
      %528 = vmatpush2.msra.mxu0 0.0
      %529 = vmatprep.subr.mxu0 0.0
      %530 = vmatpush2.msra.mxu0 0.0
      %531 = vmatprep.subr.mxu0 0.0
      %532 = vmatpush2.msra.mxu0 0.0
      %533 = vmatprep.subr.mxu0 0.0
      %534 = vmatpush2.msra.mxu0 0.0
      %535 = vmatprep.subr.mxu0 0.0
      %536 = vmatpush2.msra.mxu0 0.0
      %537 = vmatprep.subr.mxu0 0.0
      %538 = vmatpush2.msra.mxu0 0.0
      %539 = vmatprep.subr.mxu0 0.0
      %540 = vmatpush2.msra.mxu0 0.0
      %541 = vmatprep.subr.mxu0 0.0
      %542 = vmatpush2.msra.mxu0 0.0
      %543 = vmatprep.subr.mxu0 0.0
      %544 = vmatpush2.msra.mxu0 0.0
      %545 = vmatprep.mubr.f32.mxu0 0.0
      %546 = vmatmul.mubr.f32.gmra.mxu0 %v476
      %v547 = vpop.f32.mrf.mxu0
      %v548 = vadd.f32 %v473, %v547
      %v549 = vpop.f32.mrf.mxu0
      %550 = vmatprep.mubr.f32.mxu0 0.0
      %551 = vmatmul.mubr.f32.gmra.mxu0 %v479
      %v552 = vpop.f32.mrf.mxu0
      %v553 = vadd.f32 %v473, %v552
      %v554 = vpop.f32.mrf.mxu0
      %555 = vdwg.mxu0
      %vm556 = vcmask 15360
      %557 = vst.msk [vmem:[%s367] sm:$0xff] %vm556, %v548
      %558 = vst.msk [vmem:[%s367 + $0x8] sm:$0xff] %vm556, %v553
      %s559 = smul.u32 2, %s25
      %p560 = scmp.lt.s32.totalorder %s559, 5
      %s561 = scalar_select %p560, %s559, 5
      %s562 = smul.addr %s561, 8
      %s563 = scalar_lea.vmem %s6, %s562
      %s564 = smul.u32 2, %s25
      %p565 = scmp.lt.s32.totalorder %s564, 5
      %s566 = scalar_select %p565, %s564, 5
      %s567 = smul.addr %s566, 8
      %s568 = scalar_lea.vmem %s7, %s567
      // Predicated region
      $region41: #{_fused_forward.1} parent=39 // pred_check
        %p569 = pneg %p181
      $region42: #{_fused_forward.1} parent=39 // pred_check_branch
        %571 = sbr.rel (%p569) target = $region44
      $region43: #{_fused_forward.1} parent=39 // pred_region
        %s572 = smul.u32 2, %s25
      $region44: #{_fused_forward.1} parent=39 // pred_fallthru
        _
      // Predicated region
      $region45: #{_fused_forward.1} parent=39 // pred_check
        %p573 = pneg %p207
      $region46: #{_fused_forward.1} parent=39 // pred_check_branch
        %575 = sbr.rel (%p573) target = $region48
      $region47: #{_fused_forward.1} parent=39 // pred_region
        %s576 = smul.u32 2, %s25
      $region48: #{_fused_forward.1} parent=39 // pred_fallthru
        _
    $region40: #{_fused_forward.1} parent=5 // pred_fallthru
      _
    %p577 = scmp.le.s32.totalorder 2, %s20
    // Predicated region
    $region49: #{_fused_forward.1} parent=5 // pred_check
      %p578 = pneg %p577
    $region50: #{_fused_forward.1} parent=5 // pred_check_branch
      %580 = sbr.rel (%p578) target = $region52
    $region51: #{_fused_forward.1} parent=5 // pred_region
      %s581 = ssub.s32 %s20, 2
      // Predicated region
      $region53: #{_fused_forward.1} parent=51 // pred_check
        %p582 = pneg %p187
      $region54: #{_fused_forward.1} parent=51 // pred_check_branch
        %584 = sbr.rel (%p582) target = $region56
      $region55: #{_fused_forward.1} parent=51 // pred_region
        %s585 = smul.u32 2, %s26
        %p586 = scmp.lt.s32.totalorder %s585, 5
        %s587 = scalar_select %p586, %s585, 5
        %s588 = smul.addr %s587, 8
        %s589 = scalar_lea.vmem %s6, %s588
      $region56: #{_fused_forward.1} parent=51 // pred_fallthru
        _
      // Predicated region
      $region57: #{_fused_forward.1} parent=51 // pred_check
        %p590 = pneg %p213
      $region58: #{_fused_forward.1} parent=51 // pred_check_branch
        %592 = sbr.rel (%p590) target = $region60
      $region59: #{_fused_forward.1} parent=51 // pred_region
        %s593 = smul.u32 2, %s26
        %p594 = scmp.lt.s32.totalorder %s593, 5
        %s595 = scalar_select %p594, %s593, 5
        %s596 = smul.addr %s595, 8
        %s597 = scalar_lea.vmem %s7, %s596
      $region60: #{_fused_forward.1} parent=51 // pred_fallthru
        _
    $region52: #{_fused_forward.1} parent=5 // pred_fallthru
      _
  $region6: #{_fused_forward.1} parent=0 // loop_footer
    %s24 = sadd.s32 1, %s20
  $region7: #{_fused_forward.1} parent=0 // loop_footer_branch
    %19 = sbr.rel target = $region3
  $region8: #{_fused_forward.1} parent=0 // loop_exit
    _

</llo_original>
